<compile_context>
chip_gen: v7x
topology: tpu7x:2x2x1
jax: 0.10.0
libtpu: 0.0.40
codegen_flags: <defaults>
</compile_context>

<pallas_src>
import functools
import math

import jax
import jax.numpy as jnp
from jax.experimental import pallas as pl
from jax.experimental.pallas import tpu as pltpu

SMOOTH = 1e-5


def _round_up(x, m):
    return ((x + m - 1) // m) * m


def _dice_partial_kernel(score_ref, labels_ref, out_ref, *, hw, n_classes,
                         apply_softmax, needs_mask, chunk):
    """Accumulate per-class [intersect, z_sum, y_sum] partials for one sample.

    score_ref : (C, tile)    scores of sample n, flattened-spatial tile m
    labels_ref: (1, tile)    integer labels for the same positions
    out_ref   : (3, C, 128)  lane-dense partial sums, resident across the
                             (arbitrary) tile axis; combined in the wrapper.
    """
    m = pl.program_id(1)
    tile = score_ref.shape[-1]

    @pl.when(m == 0)
    def _init():
        out_ref[...] = jnp.zeros_like(out_ref)

    cls = jax.lax.broadcasted_iota(jnp.int32, (n_classes, chunk), 0)
    lane = jax.lax.broadcasted_iota(jnp.int32, (1, chunk), 1)

    # chunk-wide accumulators (live in vregs; folded to 128 lanes at the end,
    # so the hot loop is pure VPU adds with short dependency chains).
    inter = jnp.zeros((n_classes, chunk), jnp.float32)
    z_sum = jnp.zeros((n_classes, chunk), jnp.float32)
    y_sum = jnp.zeros((n_classes, chunk), jnp.float32)

    for j in range(tile // chunk):                          # static unroll
        lo = j * chunk
        s = score_ref[:, lo:lo + chunk].astype(jnp.float32)      # (C, chunk)
        lab = labels_ref[:, lo:lo + chunk].astype(jnp.int32)     # (1, chunk)

        if apply_softmax:
            # class-dim softmax fused into the kernel (classes = sublane axis)
            s = s - jnp.max(s, axis=0, keepdims=True)
            s = jnp.exp(s)
            s = s / jnp.sum(s, axis=0, keepdims=True)

        onehot = lab == cls                                       # (C, chunk)
        if needs_mask:
            # ragged tail: positions >= hw contribute nothing
            valid = (m * tile + lo + lane) < hw                   # (1, chunk)
            onehot = jnp.logical_and(onehot, valid)
            s = jnp.where(valid, s, 0.0)

        inter = inter + jnp.where(onehot, s, 0.0)     # sum(score * target)
        z_sum = z_sum + s * s                         # sum(score * score)
        y_sum = y_sum + onehot.astype(jnp.float32)    # sum(target)  (t*t == t)

    def _fold(x):   # (C, chunk) -> (C, 128): element-wise adds, no XLU
        r = x[:, 0:128]
        for k in range(128, chunk, 128):
            r = r + x[:, k:k + 128]
        return r

    out_ref[0] += _fold(inter)
    out_ref[1] += _fold(z_sum)
    out_ref[2] += _fold(y_sum)


def dice_loss(inputs, target, n_classes, weight=None, softmax=False,
              tile_hw=8192, label_dtype=None):
    """Pallas TPU implementation of DiceLoss.forward.

    inputs: (N, C, H, W) scores (f32 or bf16), NCHW like the PyTorch module.
    target: (N, H, W) integer class labels.
    """
    N, C, H, W = inputs.shape
    assert C == n_classes, f"predict C={C} & n_classes={n_classes} do not match"
    assert target.shape == (N, H, W)

    if weight is None:
        weight = [1.0] * n_classes
    weight = jnp.asarray(weight, jnp.float32)

    HW = H * W
    # Free (metadata-only) reshapes; the kernel streams the NCHW data in place.
    score = inputs.reshape(N, C, HW)
    if label_dtype is None:
        label_dtype = jnp.int32   # int8 (n_classes<=127) trims label HBM traffic further
    labels = target.reshape(N, 1, HW).astype(label_dtype)

    # Lane-tile selection: big tiles amortize per-grid-step overhead; clamp to
    # the (padded) spatial extent, a VMEM budget, and a sane unroll limit.
    hw_pad = _round_up(HW, 128)
    tile = max(128, min(_round_up(max(tile_hw, 128), 128), hw_pad, 65536))
    max_by_vmem = max(128, ((4 * 1024 * 1024) // (4 * C)) // 128 * 128)
    tile = min(tile, max_by_vmem)

    # chunk = in-kernel working width (multiple of 128 that divides the tile),
    # capped so the chunk-wide accumulators stay small for large C.
    cap = max(1, 4 // ((n_classes + 7) // 8))          # 128-lane groups / chunk
    chunk = 128 * math.gcd(tile // 128, cap)

    needs_mask = (HW % tile) != 0
    grid = (N, pl.cdiv(HW, tile))

    kernel = functools.partial(
        _dice_partial_kernel, hw=HW, n_classes=n_classes,
        apply_softmax=bool(softmax), needs_mask=needs_mask, chunk=chunk)

    partials = pl.pallas_call(
        kernel,
        out_shape=jax.ShapeDtypeStruct((N, 3, n_classes, 128), jnp.float32),
        grid_spec=pltpu.PrefetchScalarGridSpec(
            num_scalar_prefetch=0,
            grid=grid,
            in_specs=[
                pl.BlockSpec((None, C, tile), lambda n, m: (n, 0, m)),   # scores
                pl.BlockSpec((None, 1, tile), lambda n, m: (n, 0, m)),   # labels
            ],
            out_specs=pl.BlockSpec((None, 3, C, 128),
                                   lambda n, m: (n, 0, 0, 0)),
        ),
        compiler_params=pltpu.CompilerParams(
            dimension_semantics=("parallel", "arbitrary")),
    )(score, labels)

    # Tiny wrapper-side finalize: combine per-sample/per-lane partials.
    sums = jnp.sum(partials, axis=(0, 3))              # (3, C)
    intersect, z_sum, y_sum = sums[0], sums[1], sums[2]
    dice = 1.0 - (2.0 * intersect + SMOOTH) / (z_sum + y_sum + SMOOTH)
    return jnp.sum(dice * weight) / n_classes


def _dice_loss_ref(inputs, target, n_classes, weight=None, softmax=False):
    """Pure-JAX reference mirroring the PyTorch module."""
    if softmax:
        inputs = jax.nn.softmax(inputs, axis=1)
    if weight is None:
        weight = [1.0] * n_classes
    t = jax.nn.one_hot(target, n_classes, axis=1, dtype=jnp.float32)
    loss = 0.0
    for i in range(n_classes):
        s_i = inputs[:, i]
        t_i = t[:, i]
        intersect = jnp.sum(s_i * t_i)
        y = jnp.sum(t_i * t_i)
        z = jnp.sum(s_i * s_i)
        dice = 1.0 - (2.0 * intersect + SMOOTH) / (z + y + SMOOTH)
        loss = loss + dice * weight[i]
    return loss / n_classes


if __name__ == "__main__":
    key = jax.random.PRNGKey(0)
    N, C, H, W = 2, 4, 16, 16
    k1, k2 = jax.random.split(key)
    logits = jax.random.normal(k1, (N, C, H, W), jnp.float32)
    target = jax.random.randint(k2, (N, H, W), 0, C)

    # 1) probability-like scores, no softmax (module's default path)
    probs = jax.nn.softmax(logits, axis=1)
    loss1 = jax.block_until_ready(dice_loss(probs, target, n_classes=C, softmax=False))
    ref1 = _dice_loss_ref(probs, target, C, softmax=False)
    assert abs(float(loss1) - float(ref1)) < 1e-4, (loss1, ref1)

    # 2) logits in, fused in-kernel softmax + class weights
    wts = [0.5, 1.0, 1.5, 2.0]
    loss2 = jax.block_until_ready(
        dice_loss(logits, target, n_classes=C, weight=wts, softmax=True))
    ref2 = _dice_loss_ref(logits, target, C, weight=wts, softmax=True)
    assert abs(float(loss2) - float(ref2)) < 1e-4, (loss2, ref2)

    # 3) ragged spatial extent (exercises the in-kernel tail mask), N=1, odd C
    N3, C3, H3, W3 = 1, 3, 7, 9
    k3, k4 = jax.random.split(k2)
    x3 = jax.nn.softmax(jax.random.normal(k3, (N3, C3, H3, W3), jnp.float32), axis=1)
    t3 = jax.random.randint(k4, (N3, H3, W3), 0, C3)
    loss3 = jax.block_until_ready(dice_loss(x3, t3, n_classes=C3))
    ref3 = _dice_loss_ref(x3, t3, C3)
    assert abs(float(loss3) - float(ref3)) < 1e-4, (loss3, ref3)

    print("KERNEL_OK")
</pallas_src>

<mosaic_0001>
module attributes {stable_mosaic.version = 11 : i64} {
  func.func @_dice_partial_kernel(%arg0: i32, %arg1: i32, %arg2: memref<1x4x256xf32, #tpu.memory_space<vmem>>, %arg3: memref<1x1x256xi32, #tpu.memory_space<vmem>>, %arg4: memref<1x3x4x128xf32, #tpu.memory_space<vmem>>) attributes {dimension_semantics = [#tpu.dimension_semantics<parallel>, #tpu.dimension_semantics<arbitrary>], iteration_bounds = array<i64: 2, 1>, scalar_prefetch = 0 : i64, scratch_operands = 0 : i64, tpu.core_type = #tpu.core_type<tc>, window_params = [{transform_indices = @transform_0, window_bounds = array<i64: 1, 4, 256>}, {transform_indices = @transform_1, window_bounds = array<i64: 1, 1, 256>}, {transform_indices = @transform_2, window_bounds = array<i64: 1, 3, 4, 128>}]} {
    %c0_i32 = arith.constant 0 : i32
    %0 = arith.cmpi eq, %arg1, %c0_i32 : i32
    %1 = arith.extui %0 : i1 to i32
    %c0_i32_0 = arith.constant 0 : i32
    %2 = arith.cmpi ne, %1, %c0_i32_0 : i32
    scf.if %2 {
      %cst_31 = arith.constant 0.000000e+00 : f32
      %48 = vector.broadcast %cst_31 : f32 to vector<3x4x128xf32>
      %c0_32 = arith.constant 0 : index
      %c0_33 = arith.constant 0 : index
      %c0_34 = arith.constant 0 : index
      %c0_35 = arith.constant 0 : index
      %49 = vector.load %arg4[%c0_32, %c0_33, %c0_34, %c0_35] : memref<1x3x4x128xf32, #tpu.memory_space<vmem>>, vector<1x3x4x128xf32>
      %50 = vector.shape_cast %49 : vector<1x3x4x128xf32> to vector<3x4x128xf32>
      %51 = vector.shape_cast %48 : vector<3x4x128xf32> to vector<1x3x4x128xf32>
      tpu.vector_store %arg4[%c0_32, %c0_33, %c0_34, %c0_35], %51 {strides = array<i32>} : memref<1x3x4x128xf32, #tpu.memory_space<vmem>>, vector<1x3x4x128xf32>,
    } else {
    }
    %3 = tpu.iota {dimensions = array<i32: 0>} : vector<4x256xi32>
    %cst = arith.constant 0.000000e+00 : f32
    %4 = vector.broadcast %cst : f32 to vector<4x256xf32>
    %cst_1 = arith.constant 0.000000e+00 : f32
    %5 = vector.broadcast %cst_1 : f32 to vector<4x256xf32>
    %cst_2 = arith.constant 0.000000e+00 : f32
    %6 = vector.broadcast %cst_2 : f32 to vector<4x256xf32>
    %c0 = arith.constant 0 : index
    %c0_3 = arith.constant 0 : index
    %c0_4 = arith.constant 0 : index
    %7 = vector.load %arg2[%c0, %c0_3, %c0_4] : memref<1x4x256xf32, #tpu.memory_space<vmem>>, vector<1x4x256xf32>
    %8 = vector.shape_cast %7 : vector<1x4x256xf32> to vector<4x256xf32>
    %c0_5 = arith.constant 0 : index
    %c0_6 = arith.constant 0 : index
    %c0_7 = arith.constant 0 : index
    %9 = vector.load %arg3[%c0_5, %c0_6, %c0_7] : memref<1x1x256xi32, #tpu.memory_space<vmem>>, vector<1x1x256xi32>
    %10 = vector.shape_cast %9 : vector<1x1x256xi32> to vector<1x256xi32>
    %11 = vector.broadcast %10 : vector<1x256xi32> to vector<4x256xi32>
    %12 = arith.cmpi eq, %11, %3 : vector<4x256xi32>
    %cst_8 = arith.constant 0.000000e+00 : f32
    %13 = vector.broadcast %cst_8 : f32 to vector<4x256xf32>
    %14 = arith.select %12, %8, %13 : vector<4x256xi1>, vector<4x256xf32>
    %15 = arith.addf %4, %14 : vector<4x256xf32>
    %16 = arith.mulf %8, %8 : vector<4x256xf32>
    %17 = arith.addf %5, %16 : vector<4x256xf32>
    %18 = arith.extui %12 : vector<4x256xi1> to vector<4x256xi32>
    %19 = arith.sitofp %18 : vector<4x256xi32> to vector<4x256xf32>
    %20 = arith.addf %6, %19 : vector<4x256xf32>
    %c0_9 = arith.constant 0 : index
    %c0_10 = arith.constant 0 : index
    %c0_11 = arith.constant 0 : index
    %c0_12 = arith.constant 0 : index
    %21 = vector.load %arg4[%c0_9, %c0_10, %c0_11, %c0_12] : memref<1x3x4x128xf32, #tpu.memory_space<vmem>>, vector<1x1x4x128xf32>
    %22 = vector.shape_cast %21 : vector<1x1x4x128xf32> to vector<4x128xf32>
    %23 = vector.extract_strided_slice %15 {offsets = [0, 0], sizes = [4, 128], strides = [1, 1]} : vector<4x256xf32> to vector<4x128xf32>
    %24 = vector.extract_strided_slice %15 {offsets = [0, 128], sizes = [4, 128], strides = [1, 1]} : vector<4x256xf32> to vector<4x128xf32>
    %25 = arith.addf %23, %24 : vector<4x128xf32>
    %26 = arith.addf %22, %25 : vector<4x128xf32>
    %c0_13 = arith.constant 0 : index
    %c0_14 = arith.constant 0 : index
    %c0_15 = arith.constant 0 : index
    %c0_16 = arith.constant 0 : index
    %27 = vector.load %arg4[%c0_13, %c0_14, %c0_15, %c0_16] : memref<1x3x4x128xf32, #tpu.memory_space<vmem>>, vector<1x1x4x128xf32>
    %28 = vector.shape_cast %27 : vector<1x1x4x128xf32> to vector<4x128xf32>
    %29 = vector.shape_cast %26 : vector<4x128xf32> to vector<1x1x4x128xf32>
    tpu.vector_store %arg4[%c0_13, %c0_14, %c0_15, %c0_16], %29 {strides = array<i32>} : memref<1x3x4x128xf32, #tpu.memory_space<vmem>>, vector<1x1x4x128xf32>,
    %c0_17 = arith.constant 0 : index
    %c1 = arith.constant 1 : index
    %c0_18 = arith.constant 0 : index
    %c0_19 = arith.constant 0 : index
    %30 = vector.load %arg4[%c0_17, %c1, %c0_18, %c0_19] : memref<1x3x4x128xf32, #tpu.memory_space<vmem>>, vector<1x1x4x128xf32>
    %31 = vector.shape_cast %30 : vector<1x1x4x128xf32> to vector<4x128xf32>
    %32 = vector.extract_strided_slice %17 {offsets = [0, 0], sizes = [4, 128], strides = [1, 1]} : vector<4x256xf32> to vector<4x128xf32>
    %33 = vector.extract_strided_slice %17 {offsets = [0, 128], sizes = [4, 128], strides = [1, 1]} : vector<4x256xf32> to vector<4x128xf32>
    %34 = arith.addf %32, %33 : vector<4x128xf32>
    %35 = arith.addf %31, %34 : vector<4x128xf32>
    %c0_20 = arith.constant 0 : index
    %c1_21 = arith.constant 1 : index
    %c0_22 = arith.constant 0 : index
    %c0_23 = arith.constant 0 : index
    %36 = vector.load %arg4[%c0_20, %c1_21, %c0_22, %c0_23] : memref<1x3x4x128xf32, #tpu.memory_space<vmem>>, vector<1x1x4x128xf32>
    %37 = vector.shape_cast %36 : vector<1x1x4x128xf32> to vector<4x128xf32>
    %38 = vector.shape_cast %35 : vector<4x128xf32> to vector<1x1x4x128xf32>
    tpu.vector_store %arg4[%c0_20, %c1_21, %c0_22, %c0_23], %38 {strides = array<i32>} : memref<1x3x4x128xf32, #tpu.memory_space<vmem>>, vector<1x1x4x128xf32>,
    %c0_24 = arith.constant 0 : index
    %c2 = arith.constant 2 : index
    %c0_25 = arith.constant 0 : index
    %c0_26 = arith.constant 0 : index
    %39 = vector.load %arg4[%c0_24, %c2, %c0_25, %c0_26] : memref<1x3x4x128xf32, #tpu.memory_space<vmem>>, vector<1x1x4x128xf32>
    %40 = vector.shape_cast %39 : vector<1x1x4x128xf32> to vector<4x128xf32>
    %41 = vector.extract_strided_slice %20 {offsets = [0, 0], sizes = [4, 128], strides = [1, 1]} : vector<4x256xf32> to vector<4x128xf32>
    %42 = vector.extract_strided_slice %20 {offsets = [0, 128], sizes = [4, 128], strides = [1, 1]} : vector<4x256xf32> to vector<4x128xf32>
    %43 = arith.addf %41, %42 : vector<4x128xf32>
    %44 = arith.addf %40, %43 : vector<4x128xf32>
    %c0_27 = arith.constant 0 : index
    %c2_28 = arith.constant 2 : index
    %c0_29 = arith.constant 0 : index
    %c0_30 = arith.constant 0 : index
    %45 = vector.load %arg4[%c0_27, %c2_28, %c0_29, %c0_30] : memref<1x3x4x128xf32, #tpu.memory_space<vmem>>, vector<1x1x4x128xf32>
    %46 = vector.shape_cast %45 : vector<1x1x4x128xf32> to vector<4x128xf32>
    %47 = vector.shape_cast %44 : vector<4x128xf32> to vector<1x1x4x128xf32>
    tpu.vector_store %arg4[%c0_27, %c2_28, %c0_29, %c0_30], %47 {strides = array<i32>} : memref<1x3x4x128xf32, #tpu.memory_space<vmem>>, vector<1x1x4x128xf32>,
    return
  }
  func.func @transform_0(%arg0: i32, %arg1: i32) -> (i32, i32, i32) {
    %c0_i32 = arith.constant 0 : i32
    %c0_i32_0 = arith.constant 0 : i32
    return %arg0, %c0_i32, %arg1 : i32, i32, i32
  }
  func.func @transform_1(%arg0: i32, %arg1: i32) -> (i32, i32, i32) {
    %c0_i32 = arith.constant 0 : i32
    %c0_i32_0 = arith.constant 0 : i32
    return %arg0, %c0_i32, %arg1 : i32, i32, i32
  }
  func.func @transform_2(%arg0: i32, %arg1: i32) -> (i32, i32, i32, i32) {
    %c0_i32 = arith.constant 0 : i32
    %c0_i32_0 = arith.constant 0 : i32
    %c0_i32_1 = arith.constant 0 : i32
    %c0_i32_2 = arith.constant 0 : i32
    return %arg0, %c0_i32, %c0_i32_0, %c0_i32_1 : i32, i32, i32, i32
  }
}

</mosaic_0001>

<llo_original>
// kernel: tpu_custom_call.1
$region0: #{tpu_custom_call.1}
  #allocation0 [shape = 'u32[]', space=smem, size = 0x4, offset = 0x4, fixed_abs, tag = 'smem constant byte address 0x4 - core index']
  #allocation1 [shape = 'u32[144,128]{1,0:T(1,128)}', space=vmem, size = 0x12000, scoped, tag = 'internal scratch']
  %s0 = inlined_call_operand.hbm [shape: f32[2,4,256], index: 0, kind: input, shape index: {}]
  %s1 = inlined_call_operand.hbm [shape: s32[2,1,256], index: 1, kind: input, shape index: {}]
  %s2 = inlined_call_operand.hbm [shape: f32[2,3,4,128], index: 2, kind: output, shape index: {}]
  %s3 = sld [smem:[#allocation0]]
  $region53: #{tpu_custom_call.1} parent=0
    _
  %s5 = ssub.s32 1, %s3
  %s6 = scalar_select 0, %s5, %s3
  $region1: #{tpu_custom_call.1} parent=0
    #allocation2 [shape = 'u8[8192]{0}', space=vmem, size = 0x2000, scoped, tag = 'input window, operand 0']
    #allocation3 [shape = 's32[2]{0}', space=sflag, size = 0x8, scoped, tag = 'scoped memory for tpu_custom_call.1']
    #allocation4 [shape = 's32[2]{0}', space=sflag, size = 0x8, scoped, tag = 'scoped memory for tpu_custom_call.1']
    #allocation5 [shape = 'u8[2048]{0}', space=vmem, size = 0x800, scoped, tag = 'input window, operand 1']
    #allocation6 [shape = 's32[2]{0}', space=sflag, size = 0x8, scoped, tag = 'scoped memory for tpu_custom_call.1']
    #allocation7 [shape = 'u8[12288]{0}', space=vmem, size = 0x3000, scoped, tag = 'output window, operand 0']
    %7 = vsyncpa [#allocation3], 0
    %s8 = scalar_lea.sflag [#allocation3], 1
    %9 = vsyncpa %s8, 0
    %10 = vsyncpa [#allocation6], 0
    %s11 = scalar_lea.sflag [#allocation6], 1
    %12 = vsyncpa %s11, 0
    %13 = vsyncpa [#allocation4], 0
    %s14 = scalar_lea.sflag [#allocation4], 1
    %15 = vsyncpa %s14, 0
    loop: start=0, step=1, limit=4
    $region2: #{tpu_custom_call.1} parent=1 // loop_pre_header
      _
    $region3: #{tpu_custom_call.1} parent=1 // loop_header
      %s17 = sphi 0, %s21
      %p18 = scmp.ge.s32.totalorder %s17, 4
      %s24 = sphi 0, %s36
      %s25 = sphi 0, %s32
      %s26 = sphi 0, %s24
      %s27 = sphi 0, %s25
      %s28 = sphi 0, %s26
      %s29 = sphi 0, %s27
      %s41 = sphi 0, %s43
      %s44 = sphi 0, %s41
      %s45 = sphi 0, %s44
      %s61 = sphi 0, %s45
      %s69 = sphi 0, %s71
      %s72 = sphi 0, %s69
      %s73 = sphi 0, %s72
      %s89 = sphi 0, %s73
      %s95 = sphi 0, %s97
      %s98 = sphi 0, %s95
      %s99 = sphi 0, %s98
      %s115 = sphi 0, %s99
    $region4: #{tpu_custom_call.1} parent=1 // loop_header_branch
      %20 = sbr.rel (%p18) target = $region8
    $region5: #{tpu_custom_call.1} parent=1 // loop_body
      %s22 = ssub.s32 %s17, 1
      %s23 = ssub.s32 %s17, 2
      %s30 = sadd.s32 1, %s25
      %p31 = scmp.ge.s32.totalorder %s30, 1
      %s32 = scalar_select %p31, 0, %s30
      %s33 = sadd.s32 1, %s24
      %s34 = scalar_select %p31, %s33, %s24
      %p35 = scmp.ge.s32.totalorder %s34, 2
      %s36 = scalar_select %p35, 0, %s34
      %s37 = ssub.s32 %s24, %s36
      %s38 = ssub.s32 %s25, %s32
      %s39 = sor.u32 %s37, %s38
      %p40 = scmp.eq.s32.totalorder %s39, 0
      %s42 = sadd.s32 %s41, 1
      %s43 = scalar_select %p40, %s41, %s42
      %p46 = pneg %p40
      %p47 = scmp.eq.s32.totalorder %s17, 1
      %p48 = por %p46, %p47
      %p49 = scmp.ne.s32.totalorder %s41, %s44
      %p50 = scmp.eq.s32.totalorder %s17, 0
      %p51 = por %p49, %p50
      %p52 = scmp.ne.s32.totalorder %s41, %s44
      %p53 = scmp.eq.s32.totalorder %s22, 1
      %p54 = por %p52, %p53
      %p55 = scmp.ne.s32.totalorder %s44, %s45
      %p56 = scmp.eq.s32.totalorder %s22, 0
      %p57 = por %p55, %p56
      %p58 = scmp.ne.s32.totalorder %s44, %s45
      %p59 = scmp.eq.s32.totalorder %s23, 1
      %p60 = por %p58, %p59
      %p62 = scmp.ne.s32.totalorder %s45, %s61
      %p63 = scmp.eq.s32.totalorder %s23, 0
      %p64 = por %p62, %p63
      %s65 = ssub.s32 %s24, %s36
      %s66 = ssub.s32 %s25, %s32
      %s67 = sor.u32 %s65, %s66
      %p68 = scmp.eq.s32.totalorder %s67, 0
      %s70 = sadd.s32 %s69, 1
      %s71 = scalar_select %p68, %s69, %s70
      %p74 = pneg %p68
      %p75 = scmp.eq.s32.totalorder %s17, 1
      %p76 = por %p74, %p75
      %p77 = scmp.ne.s32.totalorder %s69, %s72
      %p78 = scmp.eq.s32.totalorder %s17, 0
      %p79 = por %p77, %p78
      %p80 = scmp.ne.s32.totalorder %s69, %s72
      %p81 = scmp.eq.s32.totalorder %s22, 1
      %p82 = por %p80, %p81
      %p83 = scmp.ne.s32.totalorder %s72, %s73
      %p84 = scmp.eq.s32.totalorder %s22, 0
      %p85 = por %p83, %p84
      %p86 = scmp.ne.s32.totalorder %s72, %s73
      %p87 = scmp.eq.s32.totalorder %s23, 1
      %p88 = por %p86, %p87
      %p90 = scmp.ne.s32.totalorder %s73, %s89
      %p91 = scmp.eq.s32.totalorder %s23, 0
      %p92 = por %p90, %p91
      %s93 = ssub.s32 %s24, %s36
      %p94 = scmp.eq.s32.totalorder %s93, 0
      %s96 = sadd.s32 %s95, 1
      %s97 = scalar_select %p94, %s95, %s96
      %p100 = pneg %p94
      %p101 = scmp.eq.s32.totalorder %s17, 1
      %p102 = por %p100, %p101
      %p103 = scmp.ne.s32.totalorder %s95, %s98
      %p104 = scmp.eq.s32.totalorder %s17, 0
      %p105 = por %p103, %p104
      %p106 = scmp.ne.s32.totalorder %s95, %s98
      %p107 = scmp.eq.s32.totalorder %s22, 1
      %p108 = por %p106, %p107
      %p109 = scmp.ne.s32.totalorder %s98, %s99
      %p110 = scmp.eq.s32.totalorder %s22, 0
      %p111 = por %p109, %p110
      %p112 = scmp.ne.s32.totalorder %s98, %s99
      %p113 = scmp.eq.s32.totalorder %s23, 1
      %p114 = por %p112, %p113
      %p116 = scmp.ne.s32.totalorder %s99, %s115
      %p117 = scmp.eq.s32.totalorder %s23, 0
      %p118 = por %p116, %p117
      %p119 = scmp.le.s32.totalorder 1, %s17
      %p120 = scmp.lt.s32.totalorder %s17, 3
      %p121 = pnand %p119, %p120
      %p122 = pneg %p121
      // Predicated region
      $region9: #{tpu_custom_call.1} parent=5 // pred_check
        _
      $region10: #{tpu_custom_call.1} parent=5 // pred_check_branch
        %124 = sbr.rel (%p121) target = $region12
      $region11: #{tpu_custom_call.1} parent=5 // pred_region
        %s125 = ssub.s32 %s17, 1
      $region12: #{tpu_custom_call.1} parent=5 // pred_fallthru
        _
      %p126 = scmp.lt.s32.totalorder %s17, 2
      // Predicated region
      $region13: #{tpu_custom_call.1} parent=5 // pred_check
        %p127 = pneg %p126
      $region14: #{tpu_custom_call.1} parent=5 // pred_check_branch
        %129 = sbr.rel (%p127) target = $region16
      $region15: #{tpu_custom_call.1} parent=5 // pred_region
        // Predicated region
        $region17: #{tpu_custom_call.1} parent=15 // pred_check
          %p130 = pneg %p51
        $region18: #{tpu_custom_call.1} parent=15 // pred_check_branch
          %132 = sbr.rel (%p130) target = $region20
        $region19: #{tpu_custom_call.1} parent=15 // pred_region
          %s133 = sand.u32 %s41, 1
          %s134 = scalar_lea.sflag [#allocation3], %s133
          %s135 = sand.u32 %s41, 1
          %s136 = smul.addr %s135, 8
          %s137 = scalar_lea.vmem [#allocation2], %s136
          %s138 = smul.u32 2, %s25
          %s140 = ssub.s32 128, 128
          %141 = vsyncadd %s134, %s140
          %s142 = smul.addr %s24, 2
          %s143 = sadd.s32 %s138, %s142
          %s144 = smul.addr %s143, 64
          %s145 = scalar_lea.hbm %s0, %s144
          %s147 = sshll.u32 %s137, 4
          %s148 = int_to_ptr.vmem [resolvable:$true] %s147
          %150 = dma.hbm_to_vmem [thread:$0]  %s145, 128, %s148, %s134
        $region20: #{tpu_custom_call.1} parent=15 // pred_fallthru
          _
        // Predicated region
        $region21: #{tpu_custom_call.1} parent=15 // pred_check
          %p151 = pneg %p79
        $region22: #{tpu_custom_call.1} parent=15 // pred_check_branch
          %153 = sbr.rel (%p151) target = $region24
        $region23: #{tpu_custom_call.1} parent=15 // pred_region
          %s154 = sand.u32 %s69, 1
          %s155 = scalar_lea.sflag [#allocation6], %s154
          %s156 = sand.u32 %s69, 1
          %s157 = smul.addr %s156, 2
          %s158 = scalar_lea.vmem [#allocation5], %s157
          %s159 = smul.u32 2, %s25
          %s161 = ssub.s32 32, 32
          %162 = vsyncadd %s155, %s161
          %s163 = smul.addr %s24, 2
          %s164 = sadd.s32 %s159, %s163
          %s165 = smul.addr %s164, 16
          %s166 = scalar_lea.hbm %s1, %s165
          %s168 = sshll.u32 %s158, 4
          %s169 = int_to_ptr.vmem [resolvable:$true] %s168
          %171 = dma.hbm_to_vmem [thread:$0]  %s166, 32, %s169, %s155
        $region24: #{tpu_custom_call.1} parent=15 // pred_fallthru
          _
      $region16: #{tpu_custom_call.1} parent=5 // pred_fallthru
        _
      %p172 = scmp.le.s32.totalorder 1, %s17
      %p173 = scmp.lt.s32.totalorder %s17, 3
      %p174 = pnand %p172, %p173
      %p175 = pneg %p174
      // Predicated region
      $region25: #{tpu_custom_call.1} parent=5 // pred_check
        _
      $region26: #{tpu_custom_call.1} parent=5 // pred_check_branch
        %177 = sbr.rel (%p174) target = $region28
      $region27: #{tpu_custom_call.1} parent=5 // pred_region
        %s178 = ssub.s32 %s17, 1
        %s179 = sand.u32 %s44, 1
        %s180 = scalar_lea.sflag [#allocation3], %s179
        %s181 = sand.u32 %s44, 1
        %s182 = smul.addr %s181, 8
        %s183 = scalar_lea.vmem [#allocation2], %s182
        // Predicated region
        $region29: #{tpu_custom_call.1} parent=27 // pred_check
          %p184 = pneg %p57
        $region30: #{tpu_custom_call.1} parent=27 // pred_check_branch
          %186 = sbr.rel (%p184) target = $region32
        $region31: #{tpu_custom_call.1} parent=27 // pred_region
          %187 = dma.done %s180, 128
        $region32: #{tpu_custom_call.1} parent=27 // pred_fallthru
          _
        %s188 = sand.u32 %s72, 1
        %s189 = scalar_lea.sflag [#allocation6], %s188
        %s190 = sand.u32 %s72, 1
        %s191 = smul.addr %s190, 2
        %s192 = scalar_lea.vmem [#allocation5], %s191
        // Predicated region
        $region33: #{tpu_custom_call.1} parent=27 // pred_check
          %p193 = pneg %p85
        $region34: #{tpu_custom_call.1} parent=27 // pred_check_branch
          %195 = sbr.rel (%p193) target = $region36
        $region35: #{tpu_custom_call.1} parent=27 // pred_region
          %196 = dma.done %s189, 32
        $region36: #{tpu_custom_call.1} parent=27 // pred_fallthru
          _
        %s197 = sand.u32 %s44, 1
        %s198 = scalar_lea.sflag [#allocation3], %s197
        %s199 = sand.u32 %s44, 1
        %s200 = smul.addr %s199, 8
        %s201 = scalar_lea.vmem [#allocation2], %s200
        %p202 = pneg %p57
        %p203 = pneg %p54
        %s204 = sand.u32 %s72, 1
        %s205 = scalar_lea.sflag [#allocation6], %s204
        %s206 = sand.u32 %s72, 1
        %s207 = smul.addr %s206, 2
        %s208 = scalar_lea.vmem [#allocation5], %s207
        %p209 = pneg %p85
        %p210 = pneg %p82
        %p211 = pneg %p111
        %p212 = pneg %p108
        %s213 = sand.u32 %s98, 1
        %s214 = scalar_lea.sflag [#allocation4], %s213
        %s215 = sand.u32 %s98, 1
        %s216 = smul.addr %s215, 12
        %s217 = scalar_lea.vmem [#allocation7], %s216
        %s218 = smul.u32 2, %s27
        %s219 = smul.u32 2, %s27
        %p220 = scmp.eq.s32.totalorder %s27, 0
        // Predicated region
        $region37: #{tpu_custom_call.1} parent=27 // pred_check
          %p221 = pneg %p220
        $region38: #{tpu_custom_call.1} parent=27 // pred_check_branch
          %223 = sbr.rel (%p221) target = $region40
        $region39: #{tpu_custom_call.1} parent=27 // pred_region
          %224 = vst [vmem:[%s217] sm:$0xf] 0.0
          %225 = vst [vmem:[%s217 + $0x4] sm:$0xf] 0.0
          %226 = vst [vmem:[%s217 + $0x8] sm:$0xf] 0.0
        $region40: #{tpu_custom_call.1} parent=27 // pred_fallthru
          _
        %v227 = vlaneseq
        %v228 = vshrl.u32 %v227, 7
        %v229 = vld [vmem:[%s183] sm:$0xff]
        %v230 = vld [vmem:[%s192] sm:$0x3]
        %v231 = vlaneseq
        %v232 = vshrl.u32 %v231, 7
        %v233 = vsub.s32 0, %v232
        %v234 = vrot.slane %v230, %v233
        %v235 = vlaneseq
        %v236 = vshrl.u32 %v235, 7
        %v237 = vsub.s32 1, %v236
        %v238 = vrot.slane %v230, %v237
        %vm239 = vcmp.eq.s32.totalorder %v234, %v228
        %vm240 = vcmp.eq.s32.totalorder %v238, %v228
        %v242 = vcombine.high %v229, %v229
        %v244 = vsel %vm239, %v229, 0.0
        %v245 = vsel %vm240, %v242, 0.0
        %v246 = vadd.f32 %v244, 0.0
        %v247 = vadd.f32 %v245, 0.0
        %v248 = vmul.f32 %v229, %v229
        %v249 = vadd.f32 %v248, 0.0
        %v250 = vsel %vm239, 1, 0
        %v251 = vsel %vm240, 1, 0
        %v252 = vcvt.s32.f32 %v250
        %v253 = vcvt.s32.f32 %v251
        %v254 = vadd.f32 %v252, 0.0
        %v255 = vadd.f32 %v253, 0.0
        %v256 = vld [vmem:[%s217] sm:$0xf]
        %v257 = vadd.f32 %v246, %v247
        %v258 = vadd.f32 %v256, %v257
        %259 = vst [vmem:[%s217] sm:$0xf] %v258
        %s260 = scalar_lea.vmem %s217, 4 [#allocation7]
        %v261 = vld [vmem:[%s260] sm:$0xf]
        %v263 = vrot.slane %v249, 4
        %v265 = vadd.f32 %v249, %v263
        %v266 = vadd.f32 %v261, %v265
        %267 = vst [vmem:[%s260] sm:$0xf] %v266
        %s268 = scalar_lea.vmem %s217, 8 [#allocation7]
        %v269 = vld [vmem:[%s268] sm:$0xf]
        %v270 = vadd.f32 %v254, %v255
        %v271 = vadd.f32 %v269, %v270
        %272 = vst [vmem:[%s268] sm:$0xf] %v271
        %s273 = sand.u32 %s98, 1
        %s274 = scalar_lea.sflag [#allocation4], %s273
        %s275 = sand.u32 %s98, 1
        %s276 = smul.addr %s275, 12
        %s277 = scalar_lea.vmem [#allocation7], %s276
        // Predicated region
        $region41: #{tpu_custom_call.1} parent=27 // pred_check
          %p278 = pneg %p108
        $region42: #{tpu_custom_call.1} parent=27 // pred_check_branch
          %280 = sbr.rel (%p278) target = $region44
        $region43: #{tpu_custom_call.1} parent=27 // pred_region
          %s282 = ssub.s32 192, 192
          %283 = vsyncadd %s274, %s282
          %s284 = smul.addr %s26, 3
          %s285 = smul.addr %s284, 64
          %s286 = scalar_lea.hbm %s2, %s285
          %s287 = sshll.u32 %s277, 4
          %s288 = int_to_ptr.vmem [resolvable:$true] %s287
          %293 = dma.vmem_to_hbm [thread:$0]  %s288, 192, %s286, %s274, 64, 64, 4
        $region44: #{tpu_custom_call.1} parent=27 // pred_fallthru
          _
      $region28: #{tpu_custom_call.1} parent=5 // pred_fallthru
        _
      %p294 = scmp.le.s32.totalorder 2, %s17
      // Predicated region
      $region45: #{tpu_custom_call.1} parent=5 // pred_check
        %p295 = pneg %p294
      $region46: #{tpu_custom_call.1} parent=5 // pred_check_branch
        %297 = sbr.rel (%p295) target = $region48
      $region47: #{tpu_custom_call.1} parent=5 // pred_region
        %s298 = ssub.s32 %s17, 2
        // Predicated region
        $region49: #{tpu_custom_call.1} parent=47 // pred_check
          %p299 = pneg %p114
        $region50: #{tpu_custom_call.1} parent=47 // pred_check_branch
          %301 = sbr.rel (%p299) target = $region52
        $region51: #{tpu_custom_call.1} parent=47 // pred_region
          %s302 = sand.u32 %s99, 1
          %s303 = scalar_lea.sflag [#allocation4], %s302
          %s304 = sand.u32 %s99, 1
          %s305 = smul.addr %s304, 12
          %s306 = scalar_lea.vmem [#allocation7], %s305
          %307 = dma.done %s303, 192
        $region52: #{tpu_custom_call.1} parent=47 // pred_fallthru
          _
      $region48: #{tpu_custom_call.1} parent=5 // pred_fallthru
        _
    $region6: #{tpu_custom_call.1} parent=1 // loop_footer
      %s21 = sadd.s32 1, %s17
    $region7: #{tpu_custom_call.1} parent=1 // loop_footer_branch
      %16 = sbr.rel target = $region3
    $region8: #{tpu_custom_call.1} parent=1 // loop_exit
      _
    %308 = vsyncpa [#allocation3], 1
    %s309 = scalar_lea.sflag [#allocation3], 1
    %310 = vsyncpa %s309, 1
    %311 = vsyncpa [#allocation6], 1
    %s312 = scalar_lea.sflag [#allocation6], 1
    %313 = vsyncpa %s312, 1
    %314 = vsyncpa [#allocation4], 1
    %s315 = scalar_lea.sflag [#allocation4], 1
    %316 = vsyncpa %s315, 1

</llo_original>
